<compile_context>
chip_gen: v7x
topology: tpu7x:2x2x1
jax: 0.10.0
libtpu: 0.0.40
codegen_flags: <defaults>
</compile_context>

<pallas_src>
import functools

import jax
import jax.numpy as jnp
from jax.experimental import pallas as pl
from jax.experimental.pallas import tpu as pltpu


def meaning_embedding_kernel(
    x_ref,                         # (TB, 2*S)  [state | delta], mxu dtype
    w1_ref, b1_ref,                # block-diag branch layer 1: (2S,2H), (1,2H)
    w2_ref, b2_ref,                # block-diag branch layer 2: (2H,2H), (1,2H)
    fw1_ref, ln_off_ref, fb1_ref,  # folded LN + fusion layer 1: (2H,H),(1,H),(1,H)
    fw2_ref, fb2_ref,              # fusion layer 2 (lane-padded): (H,Ep), (1,Ep)
    out_ref,                       # (TB, Ep)
    *, hidden_dim, inv_3h,
):
    f32 = jnp.float32
    mxu = w1_ref.dtype

    # --- branch MLPs, fused via block-diagonal weights (2 matmuls, not 4) ----
    h = jnp.dot(x_ref[...], w1_ref[...], preferred_element_type=f32) + b1_ref[...]
    h = jnp.maximum(h, 0.0)
    sd = jnp.dot(h.astype(mxu), w2_ref[...], preferred_element_type=f32) + b2_ref[...]
    # sd == [s_feat | d_feat], shape (TB, 2H), f32

    # --- LayerNorm stats of the virtual concat [s, d, s-d] (no materializing) --
    H = hidden_dim
    s_feat = sd[:, :H]
    d_feat = sd[:, H:]
    diff = s_feat - d_feat
    sum_x = 2.0 * jnp.sum(s_feat, axis=-1, keepdims=True)          # Σs+Σd+Σ(s-d)
    sumsq_x = (jnp.sum(sd * sd, axis=-1, keepdims=True)            # Σs²+Σd²
               + jnp.sum(diff * diff, axis=-1, keepdims=True))     # +Σ(s-d)²
    mean = sum_x * inv_3h
    var = sumsq_x * inv_3h - mean * mean
    r = jax.lax.rsqrt(var + 1e-5)                                  # biased var, eps=1e-5

    # --- fusion layer 1: gamma/beta and the concat folded into fw1_eff -------
    #   xn @ fw1 + fb1  ==  r * (sd @ fw1_eff - mean * ln_off) + fb1_eff
    z = jnp.dot(sd.astype(mxu), fw1_ref[...], preferred_element_type=f32)
    h2 = jnp.maximum(r * (z - mean * ln_off_ref[...]) + fb1_ref[...], 0.0)

    # TODO(synk): dropout is identity here (eval mode); training-mode dropout
    # would use pltpu.prng_seed + pltpu.prng_random_bits.

    # --- fusion layer 2 (output padded to 128 lanes -> unmasked stores) ------
    out = jnp.dot(h2.astype(mxu), fw2_ref[...], preferred_element_type=f32) + fb2_ref[...]
    out_ref[...] = out.astype(out_ref.dtype)


def _round_up(x, m):
    return ((x + m - 1) // m) * m


def meaning_embedding(state, delta, params, *, mxu_dtype=jnp.bfloat16,
                      batch_tile=128):
    f32 = jnp.float32
    S = params["sw1"].shape[0]
    H = params["sw1"].shape[1]
    E = params["fw2"].shape[1]
    B = state.shape[0]

    # ---- parameter folding (f32, done once in the wrapper) ------------------
    zSH = jnp.zeros((S, H), f32)
    zHH = jnp.zeros((H, H), f32)
    w1 = jnp.concatenate(
        [jnp.concatenate([params["sw1"], zSH], axis=1),
         jnp.concatenate([zSH, params["dw1"]], axis=1)], axis=0)       # (2S, 2H)
    b1 = jnp.concatenate([params["sb1"], params["db1"]], axis=1)       # (1, 2H)
    w2 = jnp.concatenate(
        [jnp.concatenate([params["sw2"], zHH], axis=1),
         jnp.concatenate([zHH, params["dw2"]], axis=1)], axis=0)       # (2H, 2H)
    b2 = jnp.concatenate([params["sb2"], params["db2"]], axis=1)       # (1, 2H)

    fw1 = params["fw1"]                                                # (3H, H)
    G = params["ln_g"][0][:, None] * fw1                               # gamma folded rows
    fw1_eff = jnp.concatenate(
        [G[:H] + G[2 * H:], G[H:2 * H] - G[2 * H:]], axis=0)           # (2H, H)
    ln_off = params["ln_g"] @ fw1                                      # (1, H)
    fb1_eff = params["ln_b"] @ fw1 + params["fb1"]                     # (1, H)

    e_pad = _round_up(max(E, 128), 128)                                # lane-dense output
    fw2_pad = jnp.zeros((H, e_pad), f32).at[:, :E].set(params["fw2"])
    fb2_pad = jnp.zeros((1, e_pad), f32).at[:, :E].set(params["fb2"])

    # ---- batch tiling / padding ---------------------------------------------
    tb = min(batch_tile, _round_up(B, 8))
    b_pad = _round_up(B, tb)
    x = jnp.concatenate([state, delta], axis=1).astype(f32)            # (B, 2S)
    if b_pad != B:
        x = jnp.pad(x, ((0, b_pad - B), (0, 0)))
    x = x.astype(mxu_dtype)

    wc = lambda a: a.astype(mxu_dtype)   # weights go to MXU -> low precision
    operands = (
        x,
        wc(w1), b1, wc(w2), b2,
        wc(fw1_eff), ln_off, fb1_eff,
        wc(fw2_pad), fb2_pad,
    )

    def full(shape):  # weight/bias spec: resident in VMEM across grid steps
        return pl.BlockSpec(shape, lambda i: (0, 0))

    kernel = functools.partial(
        meaning_embedding_kernel, hidden_dim=H, inv_3h=1.0 / (3.0 * H))

    out = pl.pallas_call(
        kernel,
        out_shape=jax.ShapeDtypeStruct((b_pad, e_pad), f32),
        grid_spec=pltpu.PrefetchScalarGridSpec(
            num_scalar_prefetch=0,
            grid=(b_pad // tb,),
            in_specs=[
                pl.BlockSpec((tb, 2 * S), lambda i: (i, 0)),           # x tile
                full((2 * S, 2 * H)), full((1, 2 * H)),
                full((2 * H, 2 * H)), full((1, 2 * H)),
                full((2 * H, H)), full((1, H)), full((1, H)),
                full((H, e_pad)), full((1, e_pad)),
            ],
            out_specs=pl.BlockSpec((tb, e_pad), lambda i: (i, 0)),
        ),
        compiler_params=pltpu.CompilerParams(
            dimension_semantics=("parallel",),
            vmem_limit_bytes=32 * 1024 * 1024),
    )(*operands)
    return out[:B, :E]


def init_params(key, state_dim, hidden_dim, embedding_dim):
    """Deterministic synthetic init (uniform, PyTorch-like fan_in scaling)."""
    def linear(key, fan_in, fan_out):
        kw, kb = jax.random.split(key)
        bound = 1.0 / jnp.sqrt(fan_in)
        w = jax.random.uniform(kw, (fan_in, fan_out), jnp.float32, -bound, bound)
        b = jax.random.uniform(kb, (1, fan_out), jnp.float32, -bound, bound)
        return w, b

    keys = jax.random.split(key, 6)
    sw1, sb1 = linear(keys[0], state_dim, hidden_dim)
    sw2, sb2 = linear(keys[1], hidden_dim, hidden_dim)
    dw1, db1 = linear(keys[2], state_dim, hidden_dim)
    dw2, db2 = linear(keys[3], hidden_dim, hidden_dim)
    fw1, fb1 = linear(keys[4], hidden_dim * 3, hidden_dim)
    fw2, fb2 = linear(keys[5], hidden_dim, embedding_dim)
    ln_g = jnp.ones((1, hidden_dim * 3), jnp.float32)
    ln_b = jnp.zeros((1, hidden_dim * 3), jnp.float32)
    return dict(sw1=sw1, sb1=sb1, sw2=sw2, sb2=sb2,
                dw1=dw1, db1=db1, dw2=dw2, db2=db2,
                ln_g=ln_g, ln_b=ln_b,
                fw1=fw1, fb1=fb1, fw2=fw2, fb2=fb2)


def reference(state, delta, p):
    """Pure-JAX f32 reference matching the PyTorch forward (eval mode)."""
    def branch(x, w1, b1, w2, b2):
        h = jnp.maximum(x @ w1 + b1, 0.0)
        return h @ w2 + b2
    s_feat = branch(state, p["sw1"], p["sb1"], p["sw2"], p["sb2"])
    d_feat = branch(delta, p["dw1"], p["db1"], p["dw2"], p["db2"])
    x = jnp.concatenate([s_feat, d_feat, s_feat - d_feat], axis=-1)
    mean = jnp.mean(x, axis=-1, keepdims=True)
    var = jnp.mean((x - mean) ** 2, axis=-1, keepdims=True)
    xn = (x - mean) / jnp.sqrt(var + 1e-5) * p["ln_g"] + p["ln_b"]
    h = jnp.maximum(xn @ p["fw1"] + p["fb1"], 0.0)
    return h @ p["fw2"] + p["fb2"]


if __name__ == "__main__":
    B, STATE_DIM, HIDDEN_DIM, EMBED_DIM = 8, 16, 32, 24

    key = jax.random.PRNGKey(0)
    k_state, k_delta, k_params = jax.random.split(key, 3)
    state = jax.random.normal(k_state, (B, STATE_DIM), jnp.float32)
    delta = jax.random.normal(k_delta, (B, STATE_DIM), jnp.float32)
    params = init_params(k_params, STATE_DIM, HIDDEN_DIM, EMBED_DIM)

    ref = reference(state, delta, params)

    # Tight check of the algebraic refactoring (f32 MXU path).
    out_f32 = jax.block_until_ready(
        meaning_embedding(state, delta, params, mxu_dtype=jnp.float32))
    assert out_f32.shape == (B, EMBED_DIM)
    assert jnp.allclose(out_f32, ref, atol=1e-4, rtol=1e-3), "f32 mismatch vs reference"

    # Performance configuration: bf16 at the MXU, f32 accumulation/elementwise.
    out_bf16 = jax.block_until_ready(
        meaning_embedding(state, delta, params, mxu_dtype=jnp.bfloat16))
    assert out_bf16.shape == (B, EMBED_DIM)
    assert jnp.allclose(out_bf16, ref, atol=2e-2, rtol=2e-2), "bf16 mismatch vs reference"

    print("KERNEL_OK")
</pallas_src>

<mosaic_0001>
module attributes {stable_mosaic.version = 11 : i64} {
  func.func @meaning_embedding_kernel(%arg0: i32, %arg1: memref<8x32xf32, #tpu.memory_space<vmem>>, %arg2: memref<32x64xf32, #tpu.memory_space<vmem>>, %arg3: memref<1x64xf32, #tpu.memory_space<vmem>>, %arg4: memref<64x64xf32, #tpu.memory_space<vmem>>, %arg5: memref<1x64xf32, #tpu.memory_space<vmem>>, %arg6: memref<64x32xf32, #tpu.memory_space<vmem>>, %arg7: memref<1x32xf32, #tpu.memory_space<vmem>>, %arg8: memref<1x32xf32, #tpu.memory_space<vmem>>, %arg9: memref<32x128xf32, #tpu.memory_space<vmem>>, %arg10: memref<1x128xf32, #tpu.memory_space<vmem>>, %arg11: memref<8x128xf32, #tpu.memory_space<vmem>>) attributes {dimension_semantics = [#tpu.dimension_semantics<parallel>], iteration_bounds = array<i64: 1>, scalar_prefetch = 0 : i64, scratch_operands = 0 : i64, tpu.core_type = #tpu.core_type<tc>, window_params = [{transform_indices = @transform_0, window_bounds = array<i64: 8, 32>}, {pipeline_mode = #tpu.pipeline_mode<synchronous>, transform_indices = @transform_1, window_bounds = array<i64: 32, 64>}, {pipeline_mode = #tpu.pipeline_mode<synchronous>, transform_indices = @transform_2, window_bounds = array<i64: 1, 64>}, {pipeline_mode = #tpu.pipeline_mode<synchronous>, transform_indices = @transform_3, window_bounds = array<i64: 64, 64>}, {pipeline_mode = #tpu.pipeline_mode<synchronous>, transform_indices = @transform_4, window_bounds = array<i64: 1, 64>}, {pipeline_mode = #tpu.pipeline_mode<synchronous>, transform_indices = @transform_5, window_bounds = array<i64: 64, 32>}, {pipeline_mode = #tpu.pipeline_mode<synchronous>, transform_indices = @transform_6, window_bounds = array<i64: 1, 32>}, {pipeline_mode = #tpu.pipeline_mode<synchronous>, transform_indices = @transform_7, window_bounds = array<i64: 1, 32>}, {pipeline_mode = #tpu.pipeline_mode<synchronous>, transform_indices = @transform_8, window_bounds = array<i64: 32, 128>}, {pipeline_mode = #tpu.pipeline_mode<synchronous>, transform_indices = @transform_9, window_bounds = array<i64: 1, 128>}, {transform_indices = @transform_10, window_bounds = array<i64: 8, 128>}]} {
    %c0 = arith.constant 0 : index
    %c0_0 = arith.constant 0 : index
    %0 = vector.load %arg1[%c0, %c0_0] : memref<8x32xf32, #tpu.memory_space<vmem>>, vector<8x32xf32>
    %c0_1 = arith.constant 0 : index
    %c0_2 = arith.constant 0 : index
    %1 = vector.load %arg2[%c0_1, %c0_2] : memref<32x64xf32, #tpu.memory_space<vmem>>, vector<32x64xf32>
    %cst = arith.constant dense<0.000000e+00> : vector<8x64xf32>
    %2 = tpu.matmul %0, %1, %cst {dimension_numbers = #tpu.dot_dimension_numbers<[1], [0], [0], [1], [0, 0, 1, 1], [], []>} : vector<8x32xf32>, vector<32x64xf32>, vector<8x64xf32> -> vector<8x64xf32>
    %c0_3 = arith.constant 0 : index
    %c0_4 = arith.constant 0 : index
    %3 = vector.load %arg3[%c0_3, %c0_4] : memref<1x64xf32, #tpu.memory_space<vmem>>, vector<1x64xf32>
    %4 = vector.broadcast %3 : vector<1x64xf32> to vector<8x64xf32>
    %5 = arith.addf %2, %4 : vector<8x64xf32>
    %cst_5 = arith.constant 0.000000e+00 : f32
    %6 = vector.broadcast %cst_5 : f32 to vector<8x64xf32>
    %7 = arith.maximumf %5, %6 : vector<8x64xf32>
    %c0_6 = arith.constant 0 : index
    %c0_7 = arith.constant 0 : index
    %8 = vector.load %arg4[%c0_6, %c0_7] : memref<64x64xf32, #tpu.memory_space<vmem>>, vector<64x64xf32>
    %cst_8 = arith.constant dense<0.000000e+00> : vector<8x64xf32>
    %9 = tpu.matmul %7, %8, %cst_8 {dimension_numbers = #tpu.dot_dimension_numbers<[1], [0], [0], [1], [0, 0, 1, 1], [], []>} : vector<8x64xf32>, vector<64x64xf32>, vector<8x64xf32> -> vector<8x64xf32>
    %c0_9 = arith.constant 0 : index
    %c0_10 = arith.constant 0 : index
    %10 = vector.load %arg5[%c0_9, %c0_10] : memref<1x64xf32, #tpu.memory_space<vmem>>, vector<1x64xf32>
    %11 = vector.broadcast %10 : vector<1x64xf32> to vector<8x64xf32>
    %12 = arith.addf %9, %11 : vector<8x64xf32>
    %13 = vector.extract_strided_slice %12 {offsets = [0, 0], sizes = [8, 32], strides = [1, 1]} : vector<8x64xf32> to vector<8x32xf32>
    %14 = vector.extract_strided_slice %12 {offsets = [0, 32], sizes = [8, 32], strides = [1, 1]} : vector<8x64xf32> to vector<8x32xf32>
    %15 = arith.subf %13, %14 : vector<8x32xf32>
    %cst_11 = arith.constant dense<0.000000e+00> : vector<8xf32>
    %16 = vector.multi_reduction <add>, %13, %cst_11 [1] : vector<8x32xf32> to vector<8xf32>
    %17 = vector.shape_cast %16 : vector<8xf32> to vector<8x1xf32>
    %cst_12 = arith.constant 2.000000e+00 : f32
    %18 = vector.broadcast %cst_12 : f32 to vector<8x1xf32>
    %19 = arith.mulf %18, %17 : vector<8x1xf32>
    %20 = arith.mulf %12, %12 : vector<8x64xf32>
    %cst_13 = arith.constant dense<0.000000e+00> : vector<8xf32>
    %21 = vector.multi_reduction <add>, %20, %cst_13 [1] : vector<8x64xf32> to vector<8xf32>
    %22 = vector.shape_cast %21 : vector<8xf32> to vector<8x1xf32>
    %23 = arith.mulf %15, %15 : vector<8x32xf32>
    %cst_14 = arith.constant dense<0.000000e+00> : vector<8xf32>
    %24 = vector.multi_reduction <add>, %23, %cst_14 [1] : vector<8x32xf32> to vector<8xf32>
    %25 = vector.shape_cast %24 : vector<8xf32> to vector<8x1xf32>
    %26 = arith.addf %22, %25 : vector<8x1xf32>
    %cst_15 = arith.constant 0.010416667 : f32
    %27 = vector.broadcast %cst_15 : f32 to vector<8x1xf32>
    %28 = arith.mulf %19, %27 : vector<8x1xf32>
    %cst_16 = arith.constant 0.010416667 : f32
    %29 = vector.broadcast %cst_16 : f32 to vector<8x1xf32>
    %30 = arith.mulf %26, %29 : vector<8x1xf32>
    %31 = arith.mulf %28, %28 : vector<8x1xf32>
    %32 = arith.subf %30, %31 : vector<8x1xf32>
    %cst_17 = arith.constant 9.99999974E-6 : f32
    %33 = vector.broadcast %cst_17 : f32 to vector<8x1xf32>
    %34 = arith.addf %32, %33 : vector<8x1xf32>
    %35 = math.rsqrt %34 : vector<8x1xf32>
    %c0_18 = arith.constant 0 : index
    %c0_19 = arith.constant 0 : index
    %36 = vector.load %arg6[%c0_18, %c0_19] : memref<64x32xf32, #tpu.memory_space<vmem>>, vector<64x32xf32>
    %cst_20 = arith.constant dense<0.000000e+00> : vector<8x32xf32>
    %37 = tpu.matmul %12, %36, %cst_20 {dimension_numbers = #tpu.dot_dimension_numbers<[1], [0], [0], [1], [0, 0, 1, 1], [], []>} : vector<8x64xf32>, vector<64x32xf32>, vector<8x32xf32> -> vector<8x32xf32>
    %c0_21 = arith.constant 0 : index
    %c0_22 = arith.constant 0 : index
    %38 = vector.load %arg7[%c0_21, %c0_22] : memref<1x32xf32, #tpu.memory_space<vmem>>, vector<1x32xf32>
    %39 = vector.broadcast %28 : vector<8x1xf32> to vector<8x32xf32>
    %40 = vector.broadcast %38 : vector<1x32xf32> to vector<8x32xf32>
    %41 = arith.mulf %39, %40 : vector<8x32xf32>
    %42 = arith.subf %37, %41 : vector<8x32xf32>
    %43 = vector.broadcast %35 : vector<8x1xf32> to vector<8x32xf32>
    %44 = arith.mulf %43, %42 : vector<8x32xf32>
    %c0_23 = arith.constant 0 : index
    %c0_24 = arith.constant 0 : index
    %45 = vector.load %arg8[%c0_23, %c0_24] : memref<1x32xf32, #tpu.memory_space<vmem>>, vector<1x32xf32>
    %46 = vector.broadcast %45 : vector<1x32xf32> to vector<8x32xf32>
    %47 = arith.addf %44, %46 : vector<8x32xf32>
    %cst_25 = arith.constant 0.000000e+00 : f32
    %48 = vector.broadcast %cst_25 : f32 to vector<8x32xf32>
    %49 = arith.maximumf %47, %48 : vector<8x32xf32>
    %c0_26 = arith.constant 0 : index
    %c0_27 = arith.constant 0 : index
    %50 = vector.load %arg9[%c0_26, %c0_27] : memref<32x128xf32, #tpu.memory_space<vmem>>, vector<32x128xf32>
    %cst_28 = arith.constant dense<0.000000e+00> : vector<8x128xf32>
    %51 = tpu.matmul %49, %50, %cst_28 {dimension_numbers = #tpu.dot_dimension_numbers<[1], [0], [0], [1], [0, 0, 1, 1], [], []>} : vector<8x32xf32>, vector<32x128xf32>, vector<8x128xf32> -> vector<8x128xf32>
    %c0_29 = arith.constant 0 : index
    %c0_30 = arith.constant 0 : index
    %52 = vector.load %arg10[%c0_29, %c0_30] : memref<1x128xf32, #tpu.memory_space<vmem>>, vector<1x128xf32>
    %53 = vector.broadcast %52 : vector<1x128xf32> to vector<8x128xf32>
    %54 = arith.addf %51, %53 : vector<8x128xf32>
    %c0_31 = arith.constant 0 : index
    %c0_32 = arith.constant 0 : index
    %55 = vector.load %arg11[%c0_31, %c0_32] : memref<8x128xf32, #tpu.memory_space<vmem>>, vector<8x128xf32>
    tpu.vector_store %arg11[%c0_31, %c0_32], %54 {strides = array<i32>} : memref<8x128xf32, #tpu.memory_space<vmem>>, vector<8x128xf32>,
    return
  }
  func.func @transform_0(%arg0: i32) -> (i32, i32) {
    %c0_i32 = arith.constant 0 : i32
    %c0_i32_0 = arith.constant 0 : i32
    return %arg0, %c0_i32 : i32, i32
  }
  func.func @transform_1(%arg0: i32) -> (i32, i32) {
    %c0_i32 = arith.constant 0 : i32
    %c0_i32_0 = arith.constant 0 : i32
    %c0_i32_1 = arith.constant 0 : i32
    return %c0_i32, %c0_i32_0 : i32, i32
  }
  func.func @transform_2(%arg0: i32) -> (i32, i32) {
    %c0_i32 = arith.constant 0 : i32
    %c0_i32_0 = arith.constant 0 : i32
    %c0_i32_1 = arith.constant 0 : i32
    return %c0_i32, %c0_i32_0 : i32, i32
  }
  func.func @transform_3(%arg0: i32) -> (i32, i32) {
    %c0_i32 = arith.constant 0 : i32
    %c0_i32_0 = arith.constant 0 : i32
    %c0_i32_1 = arith.constant 0 : i32
    return %c0_i32, %c0_i32_0 : i32, i32
  }
  func.func @transform_4(%arg0: i32) -> (i32, i32) {
    %c0_i32 = arith.constant 0 : i32
    %c0_i32_0 = arith.constant 0 : i32
    %c0_i32_1 = arith.constant 0 : i32
    return %c0_i32, %c0_i32_0 : i32, i32
  }
  func.func @transform_5(%arg0: i32) -> (i32, i32) {
    %c0_i32 = arith.constant 0 : i32
    %c0_i32_0 = arith.constant 0 : i32
    %c0_i32_1 = arith.constant 0 : i32
    return %c0_i32, %c0_i32_0 : i32, i32
  }
  func.func @transform_6(%arg0: i32) -> (i32, i32) {
    %c0_i32 = arith.constant 0 : i32
    %c0_i32_0 = arith.constant 0 : i32
    %c0_i32_1 = arith.constant 0 : i32
    return %c0_i32, %c0_i32_0 : i32, i32
  }
  func.func @transform_7(%arg0: i32) -> (i32, i32) {
    %c0_i32 = arith.constant 0 : i32
    %c0_i32_0 = arith.constant 0 : i32
    %c0_i32_1 = arith.constant 0 : i32
    return %c0_i32, %c0_i32_0 : i32, i32
  }
  func.func @transform_8(%arg0: i32) -> (i32, i32) {
    %c0_i32 = arith.constant 0 : i32
    %c0_i32_0 = arith.constant 0 : i32
    %c0_i32_1 = arith.constant 0 : i32
    return %c0_i32, %c0_i32_0 : i32, i32
  }
  func.func @transform_9(%arg0: i32) -> (i32, i32) {
    %c0_i32 = arith.constant 0 : i32
    %c0_i32_0 = arith.constant 0 : i32
    %c0_i32_1 = arith.constant 0 : i32
    return %c0_i32, %c0_i32_0 : i32, i32
  }
  func.func @transform_10(%arg0: i32) -> (i32, i32) {
    %c0_i32 = arith.constant 0 : i32
    %c0_i32_0 = arith.constant 0 : i32
    return %arg0, %c0_i32 : i32, i32
  }
}

</mosaic_0001>

<llo_original>
// kernel: tpu_custom_call.1
$region0: #{tpu_custom_call.1}
  #allocation0 [shape = 'u32[]', space=smem, size = 0x4, offset = 0x4, fixed_abs, tag = 'smem constant byte address 0x4 - core index']
  #allocation1 [shape = 'u32[144,128]{1,0:T(1,128)}', space=vmem, size = 0x12000, scoped, tag = 'internal scratch']
  %s0 = inlined_call_operand.vmem [shape: f32[8,32], index: 0, kind: input, shape index: {}]
  %s1 = inlined_call_operand.vmem [shape: f32[32,64], index: 1, kind: input, shape index: {}]
  %s2 = inlined_call_operand.vmem [shape: f32[1,64], index: 2, kind: input, shape index: {}]
  %s3 = inlined_call_operand.vmem [shape: f32[64,64], index: 3, kind: input, shape index: {}]
  %s4 = inlined_call_operand.vmem [shape: f32[1,64], index: 4, kind: input, shape index: {}]
  %s5 = inlined_call_operand.vmem [shape: f32[64,32], index: 5, kind: input, shape index: {}]
  %s6 = inlined_call_operand.vmem [shape: f32[1,32], index: 6, kind: input, shape index: {}]
  %s7 = inlined_call_operand.vmem [shape: f32[1,32], index: 7, kind: input, shape index: {}]
  %s8 = inlined_call_operand.hbm [shape: f32[32,128], index: 8, kind: input, shape index: {}]
  %s9 = inlined_call_operand.vmem [shape: f32[1,128], index: 9, kind: input, shape index: {}]
  %s10 = inlined_call_operand.hbm [shape: f32[8,128], index: 10, kind: output, shape index: {}]
  %s11 = sld [smem:[#allocation0]]
  $region54: #{tpu_custom_call.1} parent=0
    _
  %s13 = ssub.s32 1, %s11
  %s14 = scalar_select 0, %s13, %s11
  $region1: #{tpu_custom_call.1} parent=0
    #allocation2 [shape = 'u8[16384]{0}', space=vmem, size = 0x4000, scoped, tag = 'input window, operand 8, single buffered']
    #allocation3 [shape = 's32[1]{0}', space=sflag, size = 0x4, scoped, tag = 'scoped memory for tpu_custom_call.1']
    #allocation4 [shape = 's32[1]{0}', space=sflag, size = 0x4, scoped, tag = 'scoped memory for tpu_custom_call.1']
    #allocation5 [shape = 'u8[4096]{0}', space=vmem, size = 0x1000, scoped, tag = 'output window, operand 0, single buffered']
    %15 = vsyncpa [#allocation3], 0
    %16 = vsyncpa [#allocation4], 0
    // Predicated region
    $region2: #{tpu_custom_call.1} parent=1 // pred_check
      _
    $region3: #{tpu_custom_call.1} parent=1 // pred_check_branch
      %18 = sbr.rel (0) target = $region5
    $region4: #{tpu_custom_call.1} parent=1 // pred_region
      _
    $region5: #{tpu_custom_call.1} parent=1 // pred_fallthru
      _
    // Predicated region
    $region6: #{tpu_custom_call.1} parent=1 // pred_check
      _
    $region7: #{tpu_custom_call.1} parent=1 // pred_check_branch
      %20 = sbr.rel (0) target = $region9
    $region8: #{tpu_custom_call.1} parent=1 // pred_region
      _
    $region9: #{tpu_custom_call.1} parent=1 // pred_fallthru
      _
    // Predicated region
    $region10: #{tpu_custom_call.1} parent=1 // pred_check
      _
    $region11: #{tpu_custom_call.1} parent=1 // pred_check_branch
      %22 = sbr.rel (0) target = $region13
    $region12: #{tpu_custom_call.1} parent=1 // pred_region
      _
    $region13: #{tpu_custom_call.1} parent=1 // pred_fallthru
      _
    // Predicated region
    $region14: #{tpu_custom_call.1} parent=1 // pred_check
      _
    $region15: #{tpu_custom_call.1} parent=1 // pred_check_branch
      %24 = sbr.rel (0) target = $region17
    $region16: #{tpu_custom_call.1} parent=1 // pred_region
      _
    $region17: #{tpu_custom_call.1} parent=1 // pred_fallthru
      _
    // Predicated region
    $region18: #{tpu_custom_call.1} parent=1 // pred_check
      _
    $region19: #{tpu_custom_call.1} parent=1 // pred_check_branch
      %26 = sbr.rel (0) target = $region21
    $region20: #{tpu_custom_call.1} parent=1 // pred_region
      _
    $region21: #{tpu_custom_call.1} parent=1 // pred_fallthru
      _
    // Predicated region
    $region22: #{tpu_custom_call.1} parent=1 // pred_check
      _
    $region23: #{tpu_custom_call.1} parent=1 // pred_check_branch
      %28 = sbr.rel (0) target = $region25
    $region24: #{tpu_custom_call.1} parent=1 // pred_region
      _
    $region25: #{tpu_custom_call.1} parent=1 // pred_fallthru
      _
    // Predicated region
    $region26: #{tpu_custom_call.1} parent=1 // pred_check
      _
    $region27: #{tpu_custom_call.1} parent=1 // pred_check_branch
      %30 = sbr.rel (0) target = $region29
    $region28: #{tpu_custom_call.1} parent=1 // pred_region
      _
    $region29: #{tpu_custom_call.1} parent=1 // pred_fallthru
      _
    // Predicated region
    $region30: #{tpu_custom_call.1} parent=1 // pred_check
      _
    $region31: #{tpu_custom_call.1} parent=1 // pred_check_branch
      %32 = sbr.rel (0) target = $region33
    $region32: #{tpu_custom_call.1} parent=1 // pred_region
      _
    $region33: #{tpu_custom_call.1} parent=1 // pred_fallthru
      _
    // Predicated region
    $region34: #{tpu_custom_call.1} parent=1 // pred_check
      _
    $region35: #{tpu_custom_call.1} parent=1 // pred_check_branch
      %34 = sbr.rel (0) target = $region37
    $region36: #{tpu_custom_call.1} parent=1 // pred_region
      %s36 = ssub.s32 512, 512
      %37 = vsyncadd [#allocation3], %s36
      %s38 = sshll.u32 [#allocation2], 4
      %s39 = int_to_ptr.vmem [resolvable:$true] %s38
      %44 = dma.hbm_to_vmem [thread:$0]  %s8, 512, %s39, [#allocation3], 128, 128, 8
    $region37: #{tpu_custom_call.1} parent=1 // pred_fallthru
      _
    // Predicated region
    $region38: #{tpu_custom_call.1} parent=1 // pred_check
      _
    $region39: #{tpu_custom_call.1} parent=1 // pred_check_branch
      %46 = sbr.rel (0) target = $region41
    $region40: #{tpu_custom_call.1} parent=1 // pred_region
      _
    $region41: #{tpu_custom_call.1} parent=1 // pred_fallthru
      _
    // Predicated region
    $region42: #{tpu_custom_call.1} parent=1 // pred_check
      _
    $region43: #{tpu_custom_call.1} parent=1 // pred_check_branch
      %48 = sbr.rel (0) target = $region45
    $region44: #{tpu_custom_call.1} parent=1 // pred_region
      %49 = dma.done [#allocation3], 512
    $region45: #{tpu_custom_call.1} parent=1 // pred_fallthru
      _
    %v50 = vld [vmem:[%s0] sm:$0xff]
    %v51 = vld [vmem:[%s1] sm:$0xff]
    %v52 = vld [vmem:[%s1 + $0x8] sm:$0xff]
    %v53 = vld [vmem:[%s1 + $0x10] sm:$0xff]
    %v54 = vld [vmem:[%s1 + $0x18] sm:$0xff]
    %v55 = vld [vmem:[%s2] sm:$0x1]
    %v57 = vlaneseq
    %v58 = vshrl.u32 %v57, 7
    %v59 = vsub.s32 0, %v58
    %v60 = vrot.slane %v55, %v59
    %vm62 = vcmask 261120
    %v64 = vsel %vm62, %v50, 0
    %66 = vmatprep.subr.mxu0 0.0
    %67 = vmatpush1.msra.mxu0 %v51
    %68 = vmatprep.subr.mxu0 0.0
    %69 = vmatpush1.msra.mxu0 %v52
    %70 = vmatprep.subr.mxu0 0.0
    %71 = vmatpush1.msra.mxu0 %v53
    %72 = vmatprep.subr.mxu0 0.0
    %73 = vmatpush1.msra.mxu0 %v54
    %74 = vmatprep.subr.mxu0 0.0
    %75 = vmatpush1.msra.mxu0 0.0
    %76 = vmatprep.subr.mxu0 0.0
    %77 = vmatpush1.msra.mxu0 0.0
    %78 = vmatprep.subr.mxu0 0.0
    %79 = vmatpush1.msra.mxu0 0.0
    %80 = vmatprep.subr.mxu0 0.0
    %81 = vmatpush1.msra.mxu0 0.0
    %82 = vmatprep.subr.mxu0 0.0
    %83 = vmatpush1.msra.mxu0 0.0
    %84 = vmatprep.subr.mxu0 0.0
    %85 = vmatpush1.msra.mxu0 0.0
    %86 = vmatprep.subr.mxu0 0.0
    %87 = vmatpush1.msra.mxu0 0.0
    %88 = vmatprep.subr.mxu0 0.0
    %89 = vmatpush1.msra.mxu0 0.0
    %90 = vmatprep.subr.mxu0 0.0
    %91 = vmatpush1.msra.mxu0 0.0
    %92 = vmatprep.subr.mxu0 0.0
    %93 = vmatpush1.msra.mxu0 0.0
    %94 = vmatprep.subr.mxu0 0.0
    %95 = vmatpush1.msra.mxu0 0.0
    %96 = vmatprep.subr.mxu0 0.0
    %97 = vmatpush1.msra.mxu0 0.0
    %98 = vmatprep.subr.mxu0 0.0
    %99 = vmatpush1.msra.mxu0 0.0
    %100 = vmatprep.subr.mxu0 0.0
    %101 = vmatpush1.msra.mxu0 0.0
    %102 = vmatprep.subr.mxu0 0.0
    %103 = vmatpush1.msra.mxu0 0.0
    %104 = vmatprep.subr.mxu0 0.0
    %105 = vmatpush1.msra.mxu0 0.0
    %106 = vmatprep.subr.mxu0 0.0
    %107 = vmatpush1.msra.mxu0 0.0
    %108 = vmatprep.subr.mxu0 0.0
    %109 = vmatpush1.msra.mxu0 0.0
    %110 = vmatprep.subr.mxu0 0.0
    %111 = vmatpush1.msra.mxu0 0.0
    %112 = vmatprep.subr.mxu0 0.0
    %113 = vmatpush1.msra.mxu0 0.0
    %114 = vmatprep.subr.mxu0 0.0
    %115 = vmatpush1.msra.mxu0 0.0
    %116 = vmatprep.subr.mxu0 0.0
    %117 = vmatpush1.msra.mxu0 0.0
    %118 = vmatprep.subr.mxu0 0.0
    %119 = vmatpush1.msra.mxu0 0.0
    %120 = vmatprep.subr.mxu0 0.0
    %121 = vmatpush1.msra.mxu0 0.0
    %122 = vmatprep.subr.mxu0 0.0
    %123 = vmatpush1.msra.mxu0 0.0
    %124 = vmatprep.subr.mxu0 0.0
    %125 = vmatpush1.msra.mxu0 0.0
    %126 = vmatprep.subr.mxu0 0.0
    %127 = vmatpush1.msra.mxu0 0.0
    %128 = vmatprep.subr.mxu0 0.0
    %129 = vmatpush1.msra.mxu0 0.0
    %130 = vmatprep.mubr.f32.mxu0 0.0
    %131 = vmatmul.mubr.f32.gmra.mrb[0].mxu0 %v64
    %v132 = vpop.f32.mrb[0].mxu0
    %v133 = vadd.f32 %v60, %v132
    %v134 = vpop.f32.mrb[0].mxu0
    %135 = vdwg.mxu0
    %v136 = vmax.f32 %v133, 0.0
    %v137 = vld [vmem:[%s3] sm:$0xff]
    %v138 = vld [vmem:[%s3 + $0x8] sm:$0xff]
    %v139 = vld [vmem:[%s3 + $0x10] sm:$0xff]
    %v140 = vld [vmem:[%s3 + $0x18] sm:$0xff]
    %v141 = vld [vmem:[%s3 + $0x20] sm:$0xff]
    %v142 = vld [vmem:[%s3 + $0x28] sm:$0xff]
    %v143 = vld [vmem:[%s3 + $0x30] sm:$0xff]
    %v144 = vld [vmem:[%s3 + $0x38] sm:$0xff]
    %v145 = vld [vmem:[%s4] sm:$0x1]
    %v147 = vlaneseq
    %v148 = vshrl.u32 %v147, 7
    %v149 = vsub.s32 0, %v148
    %v150 = vrot.slane %v145, %v149
    %vm152 = vcmask 523264
    %v154 = vsel %vm152, %v136, 0
    %156 = vmatprep.subr.mxu0 0.0
    %157 = vmatpush1.msra.mxu0 %v137
    %158 = vmatprep.subr.mxu0 0.0
    %159 = vmatpush1.msra.mxu0 %v138
    %160 = vmatprep.subr.mxu0 0.0
    %161 = vmatpush1.msra.mxu0 %v139
    %162 = vmatprep.subr.mxu0 0.0
    %163 = vmatpush1.msra.mxu0 %v140
    %164 = vmatprep.subr.mxu0 0.0
    %165 = vmatpush1.msra.mxu0 %v141
    %166 = vmatprep.subr.mxu0 0.0
    %167 = vmatpush1.msra.mxu0 %v142
    %168 = vmatprep.subr.mxu0 0.0
    %169 = vmatpush1.msra.mxu0 %v143
    %170 = vmatprep.subr.mxu0 0.0
    %171 = vmatpush1.msra.mxu0 %v144
    %172 = vmatprep.subr.mxu0 0.0
    %173 = vmatpush1.msra.mxu0 0.0
    %174 = vmatprep.subr.mxu0 0.0
    %175 = vmatpush1.msra.mxu0 0.0
    %176 = vmatprep.subr.mxu0 0.0
    %177 = vmatpush1.msra.mxu0 0.0
    %178 = vmatprep.subr.mxu0 0.0
    %179 = vmatpush1.msra.mxu0 0.0
    %180 = vmatprep.subr.mxu0 0.0
    %181 = vmatpush1.msra.mxu0 0.0
    %182 = vmatprep.subr.mxu0 0.0
    %183 = vmatpush1.msra.mxu0 0.0
    %184 = vmatprep.subr.mxu0 0.0
    %185 = vmatpush1.msra.mxu0 0.0
    %186 = vmatprep.subr.mxu0 0.0
    %187 = vmatpush1.msra.mxu0 0.0
    %188 = vmatprep.subr.mxu0 0.0
    %189 = vmatpush1.msra.mxu0 0.0
    %190 = vmatprep.subr.mxu0 0.0
    %191 = vmatpush1.msra.mxu0 0.0
    %192 = vmatprep.subr.mxu0 0.0
    %193 = vmatpush1.msra.mxu0 0.0
    %194 = vmatprep.subr.mxu0 0.0
    %195 = vmatpush1.msra.mxu0 0.0
    %196 = vmatprep.subr.mxu0 0.0
    %197 = vmatpush1.msra.mxu0 0.0
    %198 = vmatprep.subr.mxu0 0.0
    %199 = vmatpush1.msra.mxu0 0.0
    %200 = vmatprep.subr.mxu0 0.0
    %201 = vmatpush1.msra.mxu0 0.0
    %202 = vmatprep.subr.mxu0 0.0
    %203 = vmatpush1.msra.mxu0 0.0
    %204 = vmatprep.subr.mxu0 0.0
    %205 = vmatpush1.msra.mxu0 0.0
    %206 = vmatprep.subr.mxu0 0.0
    %207 = vmatpush1.msra.mxu0 0.0
    %208 = vmatprep.subr.mxu0 0.0
    %209 = vmatpush1.msra.mxu0 0.0
    %210 = vmatprep.subr.mxu0 0.0
    %211 = vmatpush1.msra.mxu0 0.0
    %212 = vmatprep.subr.mxu0 0.0
    %213 = vmatpush1.msra.mxu0 0.0
    %214 = vmatprep.subr.mxu0 0.0
    %215 = vmatpush1.msra.mxu0 0.0
    %216 = vmatprep.subr.mxu0 0.0
    %217 = vmatpush1.msra.mxu0 0.0
    %218 = vmatprep.subr.mxu0 0.0
    %219 = vmatpush1.msra.mxu0 0.0
    %220 = vmatprep.mubr.f32.mxu0 0.0
    %221 = vmatmul.mubr.f32.gmra.mrb[0].mxu0 %v154
    %v222 = vpop.f32.mrb[0].mxu0
    %v223 = vadd.f32 %v150, %v222
    %v224 = vpop.f32.mrb[0].mxu0
    %225 = vdwg.mxu0
    %227 = vrot.lane.b32.xlu0 %v223, 96
    %v228 = vpop.permute.xlu0 %227
    %v230 = vsub.f32 %v223, %v228
    %v231 = vsel %vm62, %v223, 0.0
    %232 = vadd.xlane.f32.xlu0 %v231
    %v233 = vpop.xlane.xlu0 %232
    %v234 = vmul.f32 %v233, 2.0
    %v235 = vmul.f32 %v223, %v223
    %v236 = vsel %vm152, %v235, 0.0
    %237 = vadd.xlane.f32.xlu0 %v236
    %v238 = vpop.xlane.xlu0 %237
    %v239 = vmul.f32 %v230, %v230
    %v240 = vsel %vm62, %v239, 0.0
    %241 = vadd.xlane.f32.xlu0 %v240
    %v242 = vpop.xlane.xlu0 %241
    %v243 = vadd.f32 %v238, %v242
    %v244 = vmul.f32 %v234, 0.010416667
    %v245 = vmul.f32 %v243, 0.010416667
    %v246 = vmul.f32 %v244, %v244
    %v247 = vsub.f32 %v245, %v246
    %v248 = vadd.f32 %v247, 1e-05
    %v249 = vrsqrt.pop %v248
    %v250 = vld [vmem:[%s5] sm:$0xff]
    %v251 = vld [vmem:[%s5 + $0x8] sm:$0xff]
    %v252 = vld [vmem:[%s5 + $0x10] sm:$0xff]
    %v253 = vld [vmem:[%s5 + $0x18] sm:$0xff]
    %v254 = vld [vmem:[%s5 + $0x20] sm:$0xff]
    %v255 = vld [vmem:[%s5 + $0x28] sm:$0xff]
    %v256 = vld [vmem:[%s5 + $0x30] sm:$0xff]
    %v257 = vld [vmem:[%s5 + $0x38] sm:$0xff]
    %v258 = vsel %vm152, %v223, 0
    %260 = vmatprep.subr.mxu0 0.0
    %261 = vmatpush1.msra.mxu0 %v250
    %262 = vmatprep.subr.mxu0 0.0
    %263 = vmatpush1.msra.mxu0 %v251
    %264 = vmatprep.subr.mxu0 0.0
    %265 = vmatpush1.msra.mxu0 %v252
    %266 = vmatprep.subr.mxu0 0.0
    %267 = vmatpush1.msra.mxu0 %v253
    %268 = vmatprep.subr.mxu0 0.0
    %269 = vmatpush1.msra.mxu0 %v254
    %270 = vmatprep.subr.mxu0 0.0
    %271 = vmatpush1.msra.mxu0 %v255
    %272 = vmatprep.subr.mxu0 0.0
    %273 = vmatpush1.msra.mxu0 %v256
    %274 = vmatprep.subr.mxu0 0.0
    %275 = vmatpush1.msra.mxu0 %v257
    %276 = vmatprep.subr.mxu0 0.0
    %277 = vmatpush1.msra.mxu0 0.0
    %278 = vmatprep.subr.mxu0 0.0
    %279 = vmatpush1.msra.mxu0 0.0
    %280 = vmatprep.subr.mxu0 0.0
    %281 = vmatpush1.msra.mxu0 0.0
    %282 = vmatprep.subr.mxu0 0.0
    %283 = vmatpush1.msra.mxu0 0.0
    %284 = vmatprep.subr.mxu0 0.0
    %285 = vmatpush1.msra.mxu0 0.0
    %286 = vmatprep.subr.mxu0 0.0
    %287 = vmatpush1.msra.mxu0 0.0
    %288 = vmatprep.subr.mxu0 0.0
    %289 = vmatpush1.msra.mxu0 0.0
    %290 = vmatprep.subr.mxu0 0.0
    %291 = vmatpush1.msra.mxu0 0.0
    %292 = vmatprep.subr.mxu0 0.0
    %293 = vmatpush1.msra.mxu0 0.0
    %294 = vmatprep.subr.mxu0 0.0
    %295 = vmatpush1.msra.mxu0 0.0
    %296 = vmatprep.subr.mxu0 0.0
    %297 = vmatpush1.msra.mxu0 0.0
    %298 = vmatprep.subr.mxu0 0.0
    %299 = vmatpush1.msra.mxu0 0.0
    %300 = vmatprep.subr.mxu0 0.0
    %301 = vmatpush1.msra.mxu0 0.0
    %302 = vmatprep.subr.mxu0 0.0
    %303 = vmatpush1.msra.mxu0 0.0
    %304 = vmatprep.subr.mxu0 0.0
    %305 = vmatpush1.msra.mxu0 0.0
    %306 = vmatprep.subr.mxu0 0.0
    %307 = vmatpush1.msra.mxu0 0.0
    %308 = vmatprep.subr.mxu0 0.0
    %309 = vmatpush1.msra.mxu0 0.0
    %310 = vmatprep.subr.mxu0 0.0
    %311 = vmatpush1.msra.mxu0 0.0
    %312 = vmatprep.subr.mxu0 0.0
    %313 = vmatpush1.msra.mxu0 0.0
    %314 = vmatprep.subr.mxu0 0.0
    %315 = vmatpush1.msra.mxu0 0.0
    %316 = vmatprep.subr.mxu0 0.0
    %317 = vmatpush1.msra.mxu0 0.0
    %318 = vmatprep.subr.mxu0 0.0
    %319 = vmatpush1.msra.mxu0 0.0
    %320 = vmatprep.subr.mxu0 0.0
    %321 = vmatpush1.msra.mxu0 0.0
    %322 = vmatprep.subr.mxu0 0.0
    %323 = vmatpush1.msra.mxu0 0.0
    %324 = vmatprep.mubr.f32.mxu0 0.0
    %325 = vmatmul.mubr.f32.gmra.mrb[0].mxu0 %v258
    %v326 = vpop.f32.mrb[0].mxu0
    %v327 = vadd.f32 0.0, %v326
    %v328 = vpop.f32.mrb[0].mxu0
    %329 = vdwg.mxu0
    %v330 = vld [vmem:[%s6] sm:$0x1]
    %v332 = vlaneseq
    %v333 = vshrl.u32 %v332, 7
    %v334 = vsub.s32 0, %v333
    %v335 = vrot.slane %v330, %v334
    %v337 = vmul.f32 %v244, %v335
    %v338 = vsub.f32 %v327, %v337
    %v339 = vmul.f32 %v249, %v338
    %v340 = vld [vmem:[%s7] sm:$0x1]
    %v342 = vlaneseq
    %v343 = vshrl.u32 %v342, 7
    %v344 = vsub.s32 0, %v343
    %v345 = vrot.slane %v340, %v344
    %v347 = vadd.f32 %v339, %v345
    %v348 = vmax.f32 %v347, 0.0
    %v349 = vld [vmem:[#allocation2] sm:$0xff]
    %v350 = vld [vmem:[#allocation2 + $0x8] sm:$0xff]
    %v351 = vld [vmem:[#allocation2 + $0x10] sm:$0xff]
    %v352 = vld [vmem:[#allocation2 + $0x18] sm:$0xff]
    %v353 = vld [vmem:[%s9] sm:$0x1]
    %v355 = vlaneseq
    %v356 = vshrl.u32 %v355, 7
    %v357 = vsub.s32 0, %v356
    %v358 = vrot.slane %v353, %v357
    %v361 = vsel %vm62, %v348, 0
    %363 = vmatprep.subr.mxu0 0.0
    %364 = vmatpush1.msra.mxu0 %v349
    %365 = vmatprep.subr.mxu0 0.0
    %366 = vmatpush1.msra.mxu0 %v350
    %367 = vmatprep.subr.mxu0 0.0
    %368 = vmatpush1.msra.mxu0 %v351
    %369 = vmatprep.subr.mxu0 0.0
    %370 = vmatpush1.msra.mxu0 %v352
    %371 = vmatprep.subr.mxu0 0.0
    %372 = vmatpush1.msra.mxu0 0.0
    %373 = vmatprep.subr.mxu0 0.0
    %374 = vmatpush1.msra.mxu0 0.0
    %375 = vmatprep.subr.mxu0 0.0
    %376 = vmatpush1.msra.mxu0 0.0
    %377 = vmatprep.subr.mxu0 0.0
    %378 = vmatpush1.msra.mxu0 0.0
    %379 = vmatprep.subr.mxu0 0.0
    %380 = vmatpush1.msra.mxu0 0.0
    %381 = vmatprep.subr.mxu0 0.0
    %382 = vmatpush1.msra.mxu0 0.0
    %383 = vmatprep.subr.mxu0 0.0
    %384 = vmatpush1.msra.mxu0 0.0
    %385 = vmatprep.subr.mxu0 0.0
    %386 = vmatpush1.msra.mxu0 0.0
    %387 = vmatprep.subr.mxu0 0.0
    %388 = vmatpush1.msra.mxu0 0.0
    %389 = vmatprep.subr.mxu0 0.0
    %390 = vmatpush1.msra.mxu0 0.0
    %391 = vmatprep.subr.mxu0 0.0
    %392 = vmatpush1.msra.mxu0 0.0
    %393 = vmatprep.subr.mxu0 0.0
    %394 = vmatpush1.msra.mxu0 0.0
    %395 = vmatprep.subr.mxu0 0.0
    %396 = vmatpush1.msra.mxu0 0.0
    %397 = vmatprep.subr.mxu0 0.0
    %398 = vmatpush1.msra.mxu0 0.0
    %399 = vmatprep.subr.mxu0 0.0
    %400 = vmatpush1.msra.mxu0 0.0
    %401 = vmatprep.subr.mxu0 0.0
    %402 = vmatpush1.msra.mxu0 0.0
    %403 = vmatprep.subr.mxu0 0.0
    %404 = vmatpush1.msra.mxu0 0.0
    %405 = vmatprep.subr.mxu0 0.0
    %406 = vmatpush1.msra.mxu0 0.0
    %407 = vmatprep.subr.mxu0 0.0
    %408 = vmatpush1.msra.mxu0 0.0
    %409 = vmatprep.subr.mxu0 0.0
    %410 = vmatpush1.msra.mxu0 0.0
    %411 = vmatprep.subr.mxu0 0.0
    %412 = vmatpush1.msra.mxu0 0.0
    %413 = vmatprep.subr.mxu0 0.0
    %414 = vmatpush1.msra.mxu0 0.0
    %415 = vmatprep.subr.mxu0 0.0
    %416 = vmatpush1.msra.mxu0 0.0
    %417 = vmatprep.subr.mxu0 0.0
    %418 = vmatpush1.msra.mxu0 0.0
    %419 = vmatprep.subr.mxu0 0.0
    %420 = vmatpush1.msra.mxu0 0.0
    %421 = vmatprep.subr.mxu0 0.0
    %422 = vmatpush1.msra.mxu0 0.0
    %423 = vmatprep.subr.mxu0 0.0
    %424 = vmatpush1.msra.mxu0 0.0
    %425 = vmatprep.subr.mxu0 0.0
    %426 = vmatpush1.msra.mxu0 0.0
    %427 = vmatprep.mubr.f32.mxu0 0.0
    %428 = vmatmul.mubr.f32.gmra.mrb[0].mxu0 %v361
    %v429 = vpop.f32.mrb[0].mxu0
    %v430 = vadd.f32 %v358, %v429
    %v431 = vpop.f32.mrb[0].mxu0
    %432 = vdwg.mxu0
    %433 = vst [vmem:[#allocation5] sm:$0xff] %v430
    // Predicated region
    $region46: #{tpu_custom_call.1} parent=1 // pred_check
      _
    $region47: #{tpu_custom_call.1} parent=1 // pred_check_branch
      %435 = sbr.rel (0) target = $region49
    $region48: #{tpu_custom_call.1} parent=1 // pred_region
      %s437 = ssub.s32 128, 128
      %438 = vsyncadd [#allocation4], %s437
      %s440 = sshll.u32 [#allocation5], 4
      %s441 = int_to_ptr.vmem [resolvable:$true] %s440
      %443 = dma.vmem_to_hbm [thread:$0]  %s441, 128, %s10, [#allocation4]
    $region49: #{tpu_custom_call.1} parent=1 // pred_fallthru
      _
    // Predicated region
    $region50: #{tpu_custom_call.1} parent=1 // pred_check
      _
    $region51: #{tpu_custom_call.1} parent=1 // pred_check_branch
      %445 = sbr.rel (0) target = $region53
    $region52: #{tpu_custom_call.1} parent=1 // pred_region
      %446 = dma.done [#allocation4], 128
    $region53: #{tpu_custom_call.1} parent=1 // pred_fallthru
      _
    %447 = vsyncpa [#allocation3], 1
    %448 = vsyncpa [#allocation4], 1

</llo_original>
